<compile_context>
chip_gen: v7x
topology: tpu7x:2x2x1
jax: 0.10.0
libtpu: 0.0.40
codegen_flags: <defaults>
</compile_context>

<pallas_src>
import jax
import jax.numpy as jnp
from jax.experimental import pallas as pl
from jax.experimental.pallas import tpu as pltpu


# --------------------------------------------------------------------------- helpers
def _roundup(x, m):
    return -(-x // m) * m


def _sublane_multiple(dtype):
    # Second-minor tiling multiple: 8 for 4-byte, 16 for 2-byte, 32 for 1-byte dtypes.
    itemsize = jnp.dtype(dtype).itemsize
    return max(8, 32 // itemsize)


def _vmem_capacity_bytes():
    try:
        return int(pltpu.get_tpu_info().vmem_capacity_bytes)
    except Exception:
        # Conservative fallback: v7x has the smallest per-TensorCore VMEM (64 MiB).
        return 64 * 1024 * 1024


def _num_tensorcores():
    try:
        info = pltpu.get_tpu_info()
        for attr in ("num_tensorcores", "num_cores", "tensorcore_count", "core_count"):
            v = getattr(info, attr, None)
            if isinstance(v, int) and v > 0:
                return v
    except Exception:
        pass
    try:
        v = getattr(jax.devices()[0], "num_cores", None)
        if isinstance(v, int) and v > 0:
            return v
    except Exception:
        pass
    return 1


# --------------------------------------------------------------------------- kernel
def _make_pad_kernel(H, W, w, const_val):
    Wo = W + 2 * w

    def pad_kernel(x_ref, o_ref):
        # x_ref: (TB, H, W)    o_ref: (TB, Ho, Wo)
        x = x_ref[...]
        tb = x.shape[0]
        dt = o_ref.dtype
        # Note: for integer dtypes a fractional constant truncates toward zero
        # (torch raises in that case); this kernel targets float image tensors.
        side = jnp.full((tb, H, w), const_val, dtype=dt)      # left/right columns
        band = jnp.concatenate([side, x.astype(dt), side], axis=2)   # (TB, H, Wo)
        cap = jnp.full((tb, w, Wo), const_val, dtype=dt)      # top/bottom rows
        # Compose the full padded tile in registers -> ONE store per block,
        # exactly one write per output element.
        o_ref[...] = jnp.concatenate([cap, band, cap], axis=1)       # (TB, Ho, Wo)

    return pad_kernel


# --------------------------------------------------------------------------- wrapper
def tfms_pad(img, w, mode='constant', constant_value=0.5,
             *, min_pallas_bytes=256 * 1024, planes_per_step=None):
    """Equivalent of TFMSPad.forward for mode='constant' with a fixed fill value."""
    assert mode == 'constant', "only 'constant' padding mode is supported"
    # TODO(synk): constant_value == 'uniform' (a fresh random scalar per call in the
    #             torch module) is not supported; only static numeric constants are.
    if w == 0:
        return img  # ConstantPad2d(0, v) is the identity

    N, C, H, W = img.shape
    Ho, Wo = H + 2 * w, W + 2 * w
    NC = N * C
    itemsize = jnp.dtype(img.dtype).itemsize

    # Tiny inputs: pallas_call fixed overhead + pipeline ramp dominate, and XLA's
    # fused pad is at least as fast.  Override with min_pallas_bytes=0 to force Pallas.
    total_bytes = NC * (H * W + Ho * Wo) * itemsize
    if total_bytes < min_pallas_bytes:
        return jnp.pad(img, ((0, 0), (0, 0), (w, w), (w, w)),
                       mode='constant', constant_values=constant_value)

    x = img.reshape(NC, H, W)  # metadata-only reshape

    # --- padded (tiled) VMEM footprint per plane ------------------------------
    sub = _sublane_multiple(img.dtype)
    in_plane_b = _roundup(H, sub) * _roundup(W, 128) * itemsize
    out_plane_b = _roundup(Ho, sub) * _roundup(Wo, 128) * itemsize
    bytes_per_plane = in_plane_b + out_plane_b

    # --- generation-aware VMEM limit & block sizing ---------------------------
    vmem_cap = _vmem_capacity_bytes()
    if vmem_cap <= 80 * 1024 * 1024:          # v7x-class: 64 MiB per TensorCore
        vmem_limit = 48 * 1024 * 1024
    else:                                      # v5e / v6e: 128 MiB
        vmem_limit = 96 * 1024 * 1024

    if planes_per_step is None:
        # Need: double-buffered (in + out) blocks + one out-sized composed tile,
        # plus a little headroom for compiler scratch.
        headroom = 4 * 1024 * 1024
        denom = 2 * bytes_per_plane + out_plane_b
        tb = max(1, (vmem_limit - headroom) // denom)
        tb = min(int(tb), NC)
        n_cores = _num_tensorcores()
        if n_cores > 1 and NC >= 3 * n_cores:
            # >= 3 steps per TensorCore so each core's pipeline overlaps
            # input fetch / compute / output writeback.
            tb = min(tb, -(-NC // (3 * n_cores)))
    else:
        tb = max(1, min(int(planes_per_step), NC))

    grid = (pl.cdiv(NC, tb),)

    kernel = _make_pad_kernel(H, W, w, float(constant_value))

    out = pl.pallas_call(
        kernel,
        out_shape=jax.ShapeDtypeStruct((NC, Ho, Wo), img.dtype),
        grid=grid,
        # last-two block dims equal the full array dims -> (8,128) rule satisfied
        in_specs=[pl.BlockSpec((tb, H, W), lambda i: (i, 0, 0))],
        out_specs=pl.BlockSpec((tb, Ho, Wo), lambda i: (i, 0, 0)),
        compiler_params=pltpu.CompilerParams(
            dimension_semantics=("parallel",),
            vmem_limit_bytes=vmem_limit,
        ),
        cost_estimate=pl.CostEstimate(
            flops=0, transcendentals=0, bytes_accessed=int(total_bytes)),
    )(x)
    return out.reshape(N, C, Ho, Wo)


# --------------------------------------------------------------------------- demo
if __name__ == "__main__":
    # Module parameters (deterministic, in-script)
    w = 2
    mode = 'constant'
    constant_value = 0.5

    key = jax.random.PRNGKey(0)
    img = jax.random.uniform(key, (2, 4, 16, 16), dtype=jnp.float32)

    ref = jnp.pad(img, ((0, 0), (0, 0), (w, w), (w, w)),
                  mode='constant', constant_values=constant_value)

    # 1) Force the Pallas kernel on the demo shape (single grid step).
    out = tfms_pad(img, w, mode=mode, constant_value=constant_value,
                   min_pallas_bytes=0)
    out = jax.block_until_ready(out)
    assert out.shape == (2, 4, 16 + 2 * w, 16 + 2 * w)
    assert out.dtype == img.dtype
    assert jnp.allclose(out, ref), "mismatch vs reference pad (single-step path)"

    # 2) Multi-step grid with a remainder block (NC=8, 3 planes/step -> 3 steps).
    out2 = tfms_pad(img, w, mode=mode, constant_value=constant_value,
                    min_pallas_bytes=0, planes_per_step=3)
    out2 = jax.block_until_ready(out2)
    assert jnp.allclose(out2, ref), "mismatch vs reference pad (multi-step path)"

    # 3) Default path: tiny input short-circuits to jnp.pad (still correct).
    out3 = jax.block_until_ready(
        tfms_pad(img, w, mode=mode, constant_value=constant_value))
    assert jnp.allclose(out3, ref), "mismatch vs reference pad (short-circuit path)"

    print("KERNEL_OK")
</pallas_src>

<mosaic_0001>
module attributes {stable_mosaic.version = 11 : i64} {
  func.func @pad_kernel(%arg0: i32, %arg1: memref<8x16x16xf32, #tpu.memory_space<vmem>>, %arg2: memref<8x20x20xf32, #tpu.memory_space<vmem>>) attributes {dimension_semantics = [#tpu.dimension_semantics<parallel>], iteration_bounds = array<i64: 1>, scalar_prefetch = 0 : i64, scratch_operands = 0 : i64, tpu.core_type = #tpu.core_type<tc>, window_params = [{transform_indices = @transform_0, window_bounds = array<i64: 8, 16, 16>}, {transform_indices = @transform_1, window_bounds = array<i64: 8, 20, 20>}]} {
    %c0 = arith.constant 0 : index
    %c0_0 = arith.constant 0 : index
    %c0_1 = arith.constant 0 : index
    %0 = vector.load %arg1[%c0, %c0_0, %c0_1] : memref<8x16x16xf32, #tpu.memory_space<vmem>>, vector<8x16x16xf32>
    %cst = arith.constant 5.000000e-01 : f32
    %1 = vector.broadcast %cst : f32 to vector<8x16x2xf32>
    %2 = tpu.concatenate %1, %0, %1 in 2 : vector<8x16x2xf32>, vector<8x16x16xf32>, vector<8x16x2xf32> -> vector<8x16x20xf32>
    %cst_2 = arith.constant 5.000000e-01 : f32
    %3 = vector.broadcast %cst_2 : f32 to vector<8x2x20xf32>
    %4 = tpu.concatenate %3, %2, %3 in 1 : vector<8x2x20xf32>, vector<8x16x20xf32>, vector<8x2x20xf32> -> vector<8x20x20xf32>
    %c0_3 = arith.constant 0 : index
    %c0_4 = arith.constant 0 : index
    %c0_5 = arith.constant 0 : index
    %5 = vector.load %arg2[%c0_3, %c0_4, %c0_5] : memref<8x20x20xf32, #tpu.memory_space<vmem>>, vector<8x20x20xf32>
    tpu.vector_store %arg2[%c0_3, %c0_4, %c0_5], %4 {strides = array<i32>} : memref<8x20x20xf32, #tpu.memory_space<vmem>>, vector<8x20x20xf32>,
    return
  }
  func.func @transform_0(%arg0: i32) -> (i32, i32, i32) {
    %c0_i32 = arith.constant 0 : i32
    %c0_i32_0 = arith.constant 0 : i32
    %c0_i32_1 = arith.constant 0 : i32
    return %arg0, %c0_i32, %c0_i32_0 : i32, i32, i32
  }
  func.func @transform_1(%arg0: i32) -> (i32, i32, i32) {
    %c0_i32 = arith.constant 0 : i32
    %c0_i32_0 = arith.constant 0 : i32
    %c0_i32_1 = arith.constant 0 : i32
    return %arg0, %c0_i32, %c0_i32_0 : i32, i32, i32
  }
}

</mosaic_0001>

<llo_original>
// kernel: tpu_custom_call.1
$region0: #{tpu_custom_call.1}
  #allocation0 [shape = 'u32[]', space=smem, size = 0x4, offset = 0x4, fixed_abs, tag = 'smem constant byte address 0x4 - core index']
  #allocation1 [shape = 'u32[144,128]{1,0:T(1,128)}', space=vmem, size = 0x12000, scoped, tag = 'internal scratch']
  %s0 = inlined_call_operand.hbm [shape: f32[8,16,16], index: 0, kind: input, shape index: {}]
  %s1 = inlined_call_operand.vmem [shape: f32[8,20,20], index: 1, kind: output, shape index: {}]
  %s2 = sld [smem:[#allocation0]]
  $region18: #{tpu_custom_call.1} parent=0
    _
  %s4 = ssub.s32 1, %s2
  %s5 = scalar_select 0, %s4, %s2
  $region1: #{tpu_custom_call.1} parent=0
    #allocation2 [shape = 'u8[65536]{0}', space=vmem, size = 0x10000, scoped, tag = 'input window, operand 0, single buffered']
    #allocation3 [shape = 's32[1]{0}', space=sflag, size = 0x4, scoped, tag = 'scoped memory for tpu_custom_call.1']
    %6 = vsyncpa [#allocation3], 0
    // Predicated region
    $region2: #{tpu_custom_call.1} parent=1 // pred_check
      _
    $region3: #{tpu_custom_call.1} parent=1 // pred_check_branch
      %8 = sbr.rel (0) target = $region5
    $region4: #{tpu_custom_call.1} parent=1 // pred_region
      %s10 = ssub.s32 2048, 2048
      %11 = vsyncadd [#allocation3], %s10
      %s12 = sshll.u32 [#allocation2], 4
      %s13 = int_to_ptr.vmem [resolvable:$true] %s12
      %18 = dma.hbm_to_vmem [thread:$0]  %s0, 2048, %s13, [#allocation3], 128, 128, 8
    $region5: #{tpu_custom_call.1} parent=1 // pred_fallthru
      _
    // Predicated region
    $region6: #{tpu_custom_call.1} parent=1 // pred_check
      _
    $region7: #{tpu_custom_call.1} parent=1 // pred_check_branch
      %20 = sbr.rel (0) target = $region9
    $region8: #{tpu_custom_call.1} parent=1 // pred_region
      %21 = dma.done [#allocation3], 2048
    $region9: #{tpu_custom_call.1} parent=1 // pred_fallthru
      _
    %v22 = vld [vmem:[#allocation2] sm:$0xff]
    %v23 = vld [vmem:[#allocation2 + $0x8] sm:$0xff]
    %v24 = vld [vmem:[#allocation2 + $0x10] sm:$0xff]
    %v25 = vld [vmem:[#allocation2 + $0x18] sm:$0xff]
    %v26 = vld [vmem:[#allocation2 + $0x20] sm:$0xff]
    %v27 = vld [vmem:[#allocation2 + $0x28] sm:$0xff]
    %v28 = vld [vmem:[#allocation2 + $0x30] sm:$0xff]
    %v29 = vld [vmem:[#allocation2 + $0x38] sm:$0xff]
    %v30 = vld [vmem:[#allocation2 + $0x40] sm:$0xff]
    %v31 = vld [vmem:[#allocation2 + $0x48] sm:$0xff]
    %v32 = vld [vmem:[#allocation2 + $0x50] sm:$0xff]
    %v33 = vld [vmem:[#allocation2 + $0x58] sm:$0xff]
    %v34 = vld [vmem:[#allocation2 + $0x60] sm:$0xff]
    %v35 = vld [vmem:[#allocation2 + $0x68] sm:$0xff]
    %v36 = vld [vmem:[#allocation2 + $0x70] sm:$0xff]
    %v37 = vld [vmem:[#allocation2 + $0x78] sm:$0xff]
    %54 = vrot.lane.b32.xlu0 %v22, 2
    %v55 = vpop.permute.xlu0 %54
    %56 = vrot.lane.b32.xlu0 %v23, 2
    %v57 = vpop.permute.xlu0 %56
    %58 = vrot.lane.b32.xlu0 %v24, 2
    %v59 = vpop.permute.xlu0 %58
    %60 = vrot.lane.b32.xlu0 %v25, 2
    %v61 = vpop.permute.xlu0 %60
    %62 = vrot.lane.b32.xlu0 %v26, 2
    %v63 = vpop.permute.xlu0 %62
    %64 = vrot.lane.b32.xlu0 %v27, 2
    %v65 = vpop.permute.xlu0 %64
    %66 = vrot.lane.b32.xlu0 %v28, 2
    %v67 = vpop.permute.xlu0 %66
    %68 = vrot.lane.b32.xlu0 %v29, 2
    %v69 = vpop.permute.xlu0 %68
    %70 = vrot.lane.b32.xlu0 %v30, 2
    %v71 = vpop.permute.xlu0 %70
    %72 = vrot.lane.b32.xlu0 %v31, 2
    %v73 = vpop.permute.xlu0 %72
    %74 = vrot.lane.b32.xlu0 %v32, 2
    %v75 = vpop.permute.xlu0 %74
    %76 = vrot.lane.b32.xlu0 %v33, 2
    %v77 = vpop.permute.xlu0 %76
    %78 = vrot.lane.b32.xlu0 %v34, 2
    %v79 = vpop.permute.xlu0 %78
    %80 = vrot.lane.b32.xlu0 %v35, 2
    %v81 = vpop.permute.xlu0 %80
    %82 = vrot.lane.b32.xlu0 %v36, 2
    %v83 = vpop.permute.xlu0 %82
    %84 = vrot.lane.b32.xlu0 %v37, 2
    %v85 = vpop.permute.xlu0 %84
    %vm102 = vcmask 15360
    %v103 = vsel %vm102, 0.5, %v55
    %v104 = vsel %vm102, 0.5, %v57
    %v105 = vsel %vm102, 0.5, %v59
    %v106 = vsel %vm102, 0.5, %v61
    %v107 = vsel %vm102, 0.5, %v63
    %v108 = vsel %vm102, 0.5, %v65
    %v109 = vsel %vm102, 0.5, %v67
    %v110 = vsel %vm102, 0.5, %v69
    %v111 = vsel %vm102, 0.5, %v71
    %v112 = vsel %vm102, 0.5, %v73
    %v113 = vsel %vm102, 0.5, %v75
    %v114 = vsel %vm102, 0.5, %v77
    %v115 = vsel %vm102, 0.5, %v79
    %v116 = vsel %vm102, 0.5, %v81
    %v117 = vsel %vm102, 0.5, %v83
    %v118 = vsel %vm102, 0.5, %v85
    %vm119 = vcmask 146432
    %v120 = vsel %vm119, %v103, 0.5
    %v121 = vsel %vm119, %v104, 0.5
    %v122 = vsel %vm119, %v105, 0.5
    %v123 = vsel %vm119, %v106, 0.5
    %v124 = vsel %vm119, %v107, 0.5
    %v125 = vsel %vm119, %v108, 0.5
    %v126 = vsel %vm119, %v109, 0.5
    %v127 = vsel %vm119, %v110, 0.5
    %v128 = vsel %vm119, %v111, 0.5
    %v129 = vsel %vm119, %v112, 0.5
    %v130 = vsel %vm119, %v113, 0.5
    %v131 = vsel %vm119, %v114, 0.5
    %v132 = vsel %vm119, %v115, 0.5
    %v133 = vsel %vm119, %v116, 0.5
    %v134 = vsel %vm119, %v117, 0.5
    %v135 = vsel %vm119, %v118, 0.5
    %vm152 = vcmask 1041408
    %v153 = vrot.slane %v120, 6
    %v154 = vrot.slane %v121, 6
    %v155 = vsel %vm152, %v153, %v154
    %v156 = vrot.slane %v122, 6
    %v157 = vrot.slane %v123, 6
    %v158 = vsel %vm152, %v156, %v157
    %v159 = vrot.slane %v124, 6
    %v160 = vrot.slane %v125, 6
    %v161 = vsel %vm152, %v159, %v160
    %v162 = vrot.slane %v126, 6
    %v163 = vrot.slane %v127, 6
    %v164 = vsel %vm152, %v162, %v163
    %v165 = vrot.slane %v128, 6
    %v166 = vrot.slane %v129, 6
    %v167 = vsel %vm152, %v165, %v166
    %v168 = vrot.slane %v130, 6
    %v169 = vrot.slane %v131, 6
    %v170 = vsel %vm152, %v168, %v169
    %v171 = vrot.slane %v132, 6
    %v172 = vrot.slane %v133, 6
    %v173 = vsel %vm152, %v171, %v172
    %v174 = vrot.slane %v134, 6
    %v175 = vrot.slane %v135, 6
    %v176 = vsel %vm152, %v174, %v175
    %v201 = vsel %vm152, 0.5, %v153
    %v202 = vsel %vm152, 0.5, %v156
    %v203 = vsel %vm152, 0.5, %v159
    %v204 = vsel %vm152, 0.5, %v162
    %v205 = vsel %vm152, 0.5, %v165
    %v206 = vsel %vm152, 0.5, %v168
    %v207 = vsel %vm152, 0.5, %v171
    %v208 = vsel %vm152, 0.5, %v174
    %v209 = vsel %vm152, %v154, 0.5
    %v210 = vsel %vm152, %v157, 0.5
    %v211 = vsel %vm152, %v160, 0.5
    %v212 = vsel %vm152, %v163, 0.5
    %v213 = vsel %vm152, %v166, 0.5
    %v214 = vsel %vm152, %v169, 0.5
    %v215 = vsel %vm152, %v172, 0.5
    %v216 = vsel %vm152, %v175, 0.5
    %vm217 = vcmask 162816
    %218 = vst.msk [vmem:[%s1] sm:$0xff] %vm217, %v201
    %219 = vst.msk [vmem:[%s1 + $0x8] sm:$0xff] %vm217, %v155
    %vm220 = vcmask 158720
    %221 = vst.msk [vmem:[%s1 + $0x10] sm:$0xf] %vm220, %v209
    %222 = vst.msk [vmem:[%s1 + $0x18] sm:$0xff] %vm217, %v202
    %223 = vst.msk [vmem:[%s1 + $0x20] sm:$0xff] %vm217, %v158
    %224 = vst.msk [vmem:[%s1 + $0x28] sm:$0xf] %vm220, %v210
    %225 = vst.msk [vmem:[%s1 + $0x30] sm:$0xff] %vm217, %v203
    %226 = vst.msk [vmem:[%s1 + $0x38] sm:$0xff] %vm217, %v161
    %227 = vst.msk [vmem:[%s1 + $0x40] sm:$0xf] %vm220, %v211
    %228 = vst.msk [vmem:[%s1 + $0x48] sm:$0xff] %vm217, %v204
    %229 = vst.msk [vmem:[%s1 + $0x50] sm:$0xff] %vm217, %v164
    %230 = vst.msk [vmem:[%s1 + $0x58] sm:$0xf] %vm220, %v212
    %231 = vst.msk [vmem:[%s1 + $0x60] sm:$0xff] %vm217, %v205
    %232 = vst.msk [vmem:[%s1 + $0x68] sm:$0xff] %vm217, %v167
    %233 = vst.msk [vmem:[%s1 + $0x70] sm:$0xf] %vm220, %v213
    %234 = vst.msk [vmem:[%s1 + $0x78] sm:$0xff] %vm217, %v206
    %235 = vst.msk [vmem:[%s1 + $0x80] sm:$0xff] %vm217, %v170
    %236 = vst.msk [vmem:[%s1 + $0x88] sm:$0xf] %vm220, %v214
    %237 = vst.msk [vmem:[%s1 + $0x90] sm:$0xff] %vm217, %v207
    %238 = vst.msk [vmem:[%s1 + $0x98] sm:$0xff] %vm217, %v173
    %239 = vst.msk [vmem:[%s1 + $0xa0] sm:$0xf] %vm220, %v215
    %240 = vst.msk [vmem:[%s1 + $0xa8] sm:$0xff] %vm217, %v208
    %241 = vst.msk [vmem:[%s1 + $0xb0] sm:$0xff] %vm217, %v176
    %242 = vst.msk [vmem:[%s1 + $0xb8] sm:$0xf] %vm220, %v216
    // Predicated region
    $region10: #{tpu_custom_call.1} parent=1 // pred_check
      _
    $region11: #{tpu_custom_call.1} parent=1 // pred_check_branch
      %244 = sbr.rel (0) target = $region13
    $region12: #{tpu_custom_call.1} parent=1 // pred_region
      _
    $region13: #{tpu_custom_call.1} parent=1 // pred_fallthru
      _
    // Predicated region
    $region14: #{tpu_custom_call.1} parent=1 // pred_check
      _
    $region15: #{tpu_custom_call.1} parent=1 // pred_check_branch
      %246 = sbr.rel (0) target = $region17
    $region16: #{tpu_custom_call.1} parent=1 // pred_region
      _
    $region17: #{tpu_custom_call.1} parent=1 // pred_fallthru
      _
    %247 = vsyncpa [#allocation3], 1

</llo_original>
